<compile_context>
chip_gen: v5e
topology: v5e:2x2
jax: 0.10.0
libtpu: 0.0.40
codegen_flags: <defaults>
</compile_context>

<pallas_src>
import jax
import jax.numpy as jnp
from jax.experimental import pallas as pl
from jax.experimental.pallas import tpu as pltpu


def conv1x1_tanh_kernel(w_ref, b_ref, x_ref, o_ref):
    # w_ref, b_ref: SMEM (Cout,) f32 scalars (scalar-prefetched)
    # x_ref:  (N, tl)        lane-dense input block
    # o_ref:  (N, Cout, tl)  lane-dense output block (NCHW-compatible)
    x = x_ref[...].astype(jnp.float32)
    cout = o_ref.shape[1]
    for c in range(cout):                       # Cout == 3: static unrolled loop
        y = jnp.tanh(w_ref[c] * x + b_ref[c])   # VPU FMA + EUP tanh
        o_ref[:, c, :] = y.astype(o_ref.dtype)


def _pick_lane_tile(hw, max_lane_block):
    """Largest 128-aligned divisor of hw <= max_lane_block; else full extent."""
    if hw <= max_lane_block:
        return hw
    cand = max_lane_block - (max_lane_block % 128)
    while cand >= 128:
        if hw % cand == 0:
            return cand
        cand -= 128
    return hw   # no aligned divisor: fall back to one full-extent block


def conv1x1_tanh(x_nchw, weight, bias, max_lane_block=8192):
    """1x1 conv (Cin=1, Cout from weight) + tanh, NCHW in / NCHW out."""
    N, Cin, H, W = x_nchw.shape
    assert Cin == 1, "kernel specializes Conv2d(1, Cout, 1)"
    Cout = weight.shape[0]
    HW = H * W

    # Cin == 1  =>  NCHW -> (N, H*W) is a pure reshape: no transpose, no pad.
    x_flat = x_nchw.reshape(N, HW)

    # One grid step for small inputs (e.g. the test: HW=256 -> single block);
    # for big inputs, lane-aligned tiles along H*W.  Keep max_lane_block modest
    # so double-buffered in + 3x-wide out blocks stay well under VMEM (64 MiB
    # on v7x, 128 MiB on v5e/v6e).
    tl = _pick_lane_tile(HW, max_lane_block)
    grid = (HW // tl,)

    # Keep parameters in f32 regardless of input dtype (no weight quantization).
    w_s = weight.reshape(Cout).astype(jnp.float32)
    b_s = bias.reshape(Cout).astype(jnp.float32)

    out = pl.pallas_call(
        conv1x1_tanh_kernel,
        out_shape=jax.ShapeDtypeStruct((N, Cout, HW), x_nchw.dtype),
        grid_spec=pltpu.PrefetchScalarGridSpec(
            num_scalar_prefetch=2,               # weight, bias -> SMEM
            grid=grid,
            in_specs=[pl.BlockSpec((N, tl), lambda j, w, b: (0, j))],
            out_specs=pl.BlockSpec((N, Cout, tl), lambda j, w, b: (0, 0, j)),
        ),
        compiler_params=pltpu.CompilerParams(
            dimension_semantics=("parallel",)),
    )(w_s, b_s, x_flat)

    # (N, Cout, H*W) is already NCHW layout: plain reshape, no transpose.
    return out.reshape(N, Cout, H, W)


def reference(x_nchw, weight, bias):
    # Pure-JAX reference: 1x1 conv == per-pixel linear map.
    w2 = weight.reshape(weight.shape[0], weight.shape[1])          # (Cout, Cin)
    y = jnp.einsum("nchw,oc->nohw", x_nchw, w2) + bias[None, :, None, None]
    return jnp.tanh(y)


if __name__ == "__main__":
    key = jax.random.PRNGKey(0)
    kx, kw, kb = jax.random.split(key, 3)

    # Module: Conv2d(in=1, out=3, kernel=1); pick N=2, H=W=16.
    x = jax.random.normal(kx, (2, 1, 16, 16), dtype=jnp.float32)
    weight = jax.random.normal(kw, (3, 1, 1, 1), dtype=jnp.float32) * 0.5
    bias = jax.random.normal(kb, (3,), dtype=jnp.float32) * 0.1

    out = conv1x1_tanh(x, weight, bias)
    out = jax.block_until_ready(out)

    ref = reference(x, weight, bias)
    assert out.shape == (2, 3, 16, 16), out.shape
    assert jnp.allclose(out, ref, atol=1e-5, rtol=1e-5), "mismatch vs reference"

    print("KERNEL_OK")
</pallas_src>

<mosaic_0001>
module attributes {stable_mosaic.version = 11 : i64} {
  func.func @conv1x1_tanh_kernel(%arg0: i32, %arg1: memref<3xf32, #tpu.memory_space<smem>>, %arg2: memref<3xf32, #tpu.memory_space<smem>>, %arg3: memref<2x256xf32, #tpu.memory_space<vmem>>, %arg4: memref<2x3x256xf32, #tpu.memory_space<vmem>>) attributes {dimension_semantics = [#tpu.dimension_semantics<parallel>], iteration_bounds = array<i64: 1>, scalar_prefetch = 2 : i64, scratch_operands = 0 : i64, tpu.core_type = #tpu.core_type<tc>, window_params = [{transform_indices = @transform_0, window_bounds = array<i64: 2, 256>}, {transform_indices = @transform_1, window_bounds = array<i64: 2, 3, 256>}]} {
    %c0 = arith.constant 0 : index
    %c0_0 = arith.constant 0 : index
    %0 = vector.load %arg3[%c0, %c0_0] : memref<2x256xf32, #tpu.memory_space<vmem>>, vector<2x256xf32>
    %c0_1 = arith.constant 0 : index
    %1 = memref.load %arg1[%c0_1] : memref<3xf32, #tpu.memory_space<smem>>
    %2 = vector.broadcast %1 : f32 to vector<2x256xf32>
    %3 = arith.mulf %2, %0 : vector<2x256xf32>
    %c0_2 = arith.constant 0 : index
    %4 = memref.load %arg2[%c0_2] : memref<3xf32, #tpu.memory_space<smem>>
    %5 = vector.broadcast %4 : f32 to vector<2x256xf32>
    %6 = arith.addf %3, %5 : vector<2x256xf32>
    %7 = math.tanh %6 : vector<2x256xf32>
    %c0_3 = arith.constant 0 : index
    %c0_4 = arith.constant 0 : index
    %c0_5 = arith.constant 0 : index
    %8 = vector.load %arg4[%c0_3, %c0_4, %c0_5] : memref<2x3x256xf32, #tpu.memory_space<vmem>>, vector<2x1x256xf32>
    %9 = vector.shape_cast %8 : vector<2x1x256xf32> to vector<2x256xf32>
    %10 = vector.shape_cast %7 : vector<2x256xf32> to vector<2x1x256xf32>
    tpu.vector_store %arg4[%c0_3, %c0_4, %c0_5], %10 {strides = array<i32>} : memref<2x3x256xf32, #tpu.memory_space<vmem>>, vector<2x1x256xf32>,
    %c1 = arith.constant 1 : index
    %11 = memref.load %arg1[%c1] : memref<3xf32, #tpu.memory_space<smem>>
    %12 = vector.broadcast %11 : f32 to vector<2x256xf32>
    %13 = arith.mulf %12, %0 : vector<2x256xf32>
    %c1_6 = arith.constant 1 : index
    %14 = memref.load %arg2[%c1_6] : memref<3xf32, #tpu.memory_space<smem>>
    %15 = vector.broadcast %14 : f32 to vector<2x256xf32>
    %16 = arith.addf %13, %15 : vector<2x256xf32>
    %17 = math.tanh %16 : vector<2x256xf32>
    %c0_7 = arith.constant 0 : index
    %c1_8 = arith.constant 1 : index
    %c0_9 = arith.constant 0 : index
    %18 = vector.load %arg4[%c0_7, %c1_8, %c0_9] : memref<2x3x256xf32, #tpu.memory_space<vmem>>, vector<2x1x256xf32>
    %19 = vector.shape_cast %18 : vector<2x1x256xf32> to vector<2x256xf32>
    %20 = vector.shape_cast %17 : vector<2x256xf32> to vector<2x1x256xf32>
    tpu.vector_store %arg4[%c0_7, %c1_8, %c0_9], %20 {strides = array<i32>} : memref<2x3x256xf32, #tpu.memory_space<vmem>>, vector<2x1x256xf32>,
    %c2 = arith.constant 2 : index
    %21 = memref.load %arg1[%c2] : memref<3xf32, #tpu.memory_space<smem>>
    %22 = vector.broadcast %21 : f32 to vector<2x256xf32>
    %23 = arith.mulf %22, %0 : vector<2x256xf32>
    %c2_10 = arith.constant 2 : index
    %24 = memref.load %arg2[%c2_10] : memref<3xf32, #tpu.memory_space<smem>>
    %25 = vector.broadcast %24 : f32 to vector<2x256xf32>
    %26 = arith.addf %23, %25 : vector<2x256xf32>
    %27 = math.tanh %26 : vector<2x256xf32>
    %c0_11 = arith.constant 0 : index
    %c2_12 = arith.constant 2 : index
    %c0_13 = arith.constant 0 : index
    %28 = vector.load %arg4[%c0_11, %c2_12, %c0_13] : memref<2x3x256xf32, #tpu.memory_space<vmem>>, vector<2x1x256xf32>
    %29 = vector.shape_cast %28 : vector<2x1x256xf32> to vector<2x256xf32>
    %30 = vector.shape_cast %27 : vector<2x256xf32> to vector<2x1x256xf32>
    tpu.vector_store %arg4[%c0_11, %c2_12, %c0_13], %30 {strides = array<i32>} : memref<2x3x256xf32, #tpu.memory_space<vmem>>, vector<2x1x256xf32>,
    return
  }
  func.func @transform_0(%arg0: i32, %arg1: memref<3xf32, #tpu.memory_space<smem>>, %arg2: memref<3xf32, #tpu.memory_space<smem>>) -> (i32, i32) {
    %c0_i32 = arith.constant 0 : i32
    %c0_i32_0 = arith.constant 0 : i32
    return %c0_i32, %arg0 : i32, i32
  }
  func.func @transform_1(%arg0: i32, %arg1: memref<3xf32, #tpu.memory_space<smem>>, %arg2: memref<3xf32, #tpu.memory_space<smem>>) -> (i32, i32, i32) {
    %c0_i32 = arith.constant 0 : i32
    %c0_i32_0 = arith.constant 0 : i32
    %c0_i32_1 = arith.constant 0 : i32
    return %c0_i32, %c0_i32_0, %arg0 : i32, i32, i32
  }
}

</mosaic_0001>

<llo_original>
// kernel: tpu_custom_call.1
$region0: #{tpu_custom_call.1}
  #allocation0 [shape = 'u32[]', space=smem, size = 0x4, offset = 0x4, fixed_abs, tag = 'smem constant byte address 0x4 - core index']
  #allocation1 [shape = 'u32[72,128]{1,0:T(1,128)}', space=vmem, size = 0x9000, scoped, tag = 'internal scratch']
  #allocation2 [shape = 's32[1]{0}', space=sflag, size = 0x4, scoped, tag = 'scoped memory for tpu_custom_call.1']
  #allocation3 [shape = 'u8[512]{0}', space=smem, size = 0x200, scoped, tag = 'prefetched SMEM operand 0']
  #allocation4 [shape = 'u8[512]{0}', space=smem, size = 0x200, scoped, tag = 'prefetched SMEM operand 1']
  %s0 = inlined_call_operand.hbm [shape: f32[3], index: 0, kind: input, shape index: {}]
  %s1 = inlined_call_operand.hbm [shape: f32[3], index: 1, kind: input, shape index: {}]
  %s2 = inlined_call_operand.hbm [shape: f32[2,256], index: 2, kind: input, shape index: {}]
  %s3 = inlined_call_operand.vmem [shape: f32[2,3,256], index: 3, kind: output, shape index: {}]
  %s4 = sld [smem:[#allocation0]]
  $region18: #{tpu_custom_call.1} parent=0
    _
  %s6 = ssub.s32 1, %s4
  %s7 = scalar_select 0, %s6, %s4
  %s9 = sshll.u32 %s0, 4
  %s10 = int_to_ptr.hbm [resolvable:$true] %s9
  %12 = dma.hbm_to_smem %s10, 16, [#allocation3], [#allocation2]
  %s14 = sshll.u32 %s1, 4
  %s15 = int_to_ptr.hbm [resolvable:$true] %s14
  %17 = dma.hbm_to_smem %s15, 16, [#allocation4], [#allocation2]
  %19 = dma.done [#allocation2], 32
  %20 = sfence
  $region1: #{tpu_custom_call.1} parent=0
    #allocation5 [shape = 'u8[2048]{0}', space=vmem, size = 0x800, scoped, tag = 'input window, operand 2, single buffered']
    #allocation6 [shape = 's32[1]{0}', space=sflag, size = 0x4, scoped, tag = 'scoped memory for tpu_custom_call.1']
    %21 = vsyncpa [#allocation6], 0
    // Predicated region
    $region2: #{tpu_custom_call.1} parent=1 // pred_check
      _
    $region3: #{tpu_custom_call.1} parent=1 // pred_check_branch
      %23 = sbr.rel (0) target = $region5
    $region4: #{tpu_custom_call.1} parent=1 // pred_region
      %25 = vsyncadd [#allocation6], 0
      %s27 = sshll.u32 %s2, 4
      %s28 = int_to_ptr.hbm [resolvable:$true] %s27
      %s29 = sshll.u32 [#allocation5], 4
      %s30 = int_to_ptr.vmem [resolvable:$true] %s29
      %32 = dma.hbm_to_vmem [thread:$0]  %s28, 64, %s30, [#allocation6]
    $region5: #{tpu_custom_call.1} parent=1 // pred_fallthru
      _
    // Predicated region
    $region6: #{tpu_custom_call.1} parent=1 // pred_check
      _
    $region7: #{tpu_custom_call.1} parent=1 // pred_check_branch
      %34 = sbr.rel (0) target = $region9
    $region8: #{tpu_custom_call.1} parent=1 // pred_region
      %36 = dma.done [#allocation6], 64
    $region9: #{tpu_custom_call.1} parent=1 // pred_fallthru
      _
    %v37 = vld [vmem:[#allocation5] sm:$0xf]
    %s38 = sld [smem:[#allocation3]]
    %v39 = vstv %s38
    %v40 = vmul.f32 %v39, %v37
    %s41 = sld [smem:[#allocation4]]
    %v42 = vstv %s41
    %v43 = vadd.f32 %v40, %v42
    %v44 = vtanh.pop %v43
    %v46 = vrot.slane %v44, 1
    %v47 = vrot.slane %v44, 2
    %v48 = vrot.slane %v44, 3
    %vm49 = vcmask 1040384
    %v50 = vsel %vm49, %v44, %v46
    %vm51 = vcmask 1042434
    %v52 = vsel %vm51, %v47, %v48
    %vm53 = vcmask 1041408
    %v54 = vsel %vm53, %v50, %v52
    %vm55 = vcmask 1041409
    %v56 = vsel %vm55, %v44, %v46
    %vm57 = vcmask 1043459
    %v58 = vsel %vm57, %v47, %v48
    %vm59 = vcmask 1042433
    %v60 = vsel %vm59, %v56, %v58
    %v61 = vrot.slane %v60, 1
    %v64 = vlaneseq
    %vm65 = vcmp.ge.s32.totalorder %v64, 0
    %vm66 = vcmp.lt.s32.totalorder %v64, 256
    %vm67 = vmand %vm65, %vm66
    %68 = vst.msk [vmem:[%s3] ss:$4 sm:$0x3] %vm67, %v54
    %s69 = scalar_lea.vmem %s3, 8
    %70 = vst.msk [vmem:[%s69] ss:$4 sm:$0x3] %vm67, %v61
    %s71 = sld [smem:[#allocation3 + $0x1]]
    %v72 = vstv %s71
    %v73 = vmul.f32 %v72, %v37
    %s74 = sld [smem:[#allocation4 + $0x1]]
    %v75 = vstv %s74
    %v76 = vadd.f32 %v73, %v75
    %v77 = vtanh.pop %v76
    %v79 = vrot.slane %v77, 1
    %v80 = vrot.slane %v77, 2
    %v81 = vrot.slane %v77, 3
    %v82 = vsel %vm49, %v77, %v79
    %v83 = vsel %vm51, %v80, %v81
    %v84 = vsel %vm53, %v82, %v83
    %v85 = vsel %vm55, %v77, %v79
    %v86 = vsel %vm57, %v80, %v81
    %v87 = vsel %vm59, %v85, %v86
    %v88 = vrot.slane %v87, 1
    %s91 = scalar_lea.vmem %s3, 1
    %92 = vst.msk [vmem:[%s91] ss:$4 sm:$0x3] %vm67, %v84
    %s93 = scalar_lea.vmem %s3, 9
    %94 = vst.msk [vmem:[%s93] ss:$4 sm:$0x3] %vm67, %v88
    %s95 = sld [smem:[#allocation3 + $0x2]]
    %v96 = vstv %s95
    %v97 = vmul.f32 %v96, %v37
    %s98 = sld [smem:[#allocation4 + $0x2]]
    %v99 = vstv %s98
    %v100 = vadd.f32 %v97, %v99
    %v101 = vtanh.pop %v100
    %v103 = vrot.slane %v101, 1
    %v104 = vrot.slane %v101, 2
    %v105 = vrot.slane %v101, 3
    %v106 = vsel %vm49, %v101, %v103
    %v107 = vsel %vm51, %v104, %v105
    %v108 = vsel %vm53, %v106, %v107
    %v109 = vsel %vm55, %v101, %v103
    %v110 = vsel %vm57, %v104, %v105
    %v111 = vsel %vm59, %v109, %v110
    %v112 = vrot.slane %v111, 1
    %s115 = scalar_lea.vmem %s3, 2
    %116 = vst.msk [vmem:[%s115] ss:$4 sm:$0x3] %vm67, %v108
    %s117 = scalar_lea.vmem %s3, 10
    %118 = vst.msk [vmem:[%s117] ss:$4 sm:$0x3] %vm67, %v112
    // Predicated region
    $region10: #{tpu_custom_call.1} parent=1 // pred_check
      _
    $region11: #{tpu_custom_call.1} parent=1 // pred_check_branch
      %120 = sbr.rel (0) target = $region13
    $region12: #{tpu_custom_call.1} parent=1 // pred_region
      _
    $region13: #{tpu_custom_call.1} parent=1 // pred_fallthru
      _
    // Predicated region
    $region14: #{tpu_custom_call.1} parent=1 // pred_check
      _
    $region15: #{tpu_custom_call.1} parent=1 // pred_check_branch
      %122 = sbr.rel (0) target = $region17
    $region16: #{tpu_custom_call.1} parent=1 // pred_region
      _
    $region17: #{tpu_custom_call.1} parent=1 // pred_fallthru
      _
    %123 = vsyncpa [#allocation6], 1

</llo_original>
